<compile_context>
chip_gen: v7x
topology: tpu7x:2x2x1
jax: 0.10.0
libtpu: 0.0.40
codegen_flags: <defaults>
</compile_context>

<pallas_src>
import jax
import jax.numpy as jnp
from jax.experimental import pallas as pl
from jax.experimental.pallas import tpu as pltpu


def _round_up(n, m):
    return ((n + m - 1) // m) * m


def mlp_kernel(x_ref, w1_ref, b1_ref, w2_ref, b2_ref, w3_ref, b3_ref, o_ref):
    # (Linear -> ReLU) x2 -> Linear -> Sigmoid, fused.
    # Weights are bf16 (MXU native); accumulate + elementwise math in f32.
    x = x_ref[...].astype(jnp.bfloat16)

    h1 = jnp.dot(x, w1_ref[...], preferred_element_type=jnp.float32) + b1_ref[...]
    h1 = jnp.maximum(h1, 0.0)

    h2 = jnp.dot(h1.astype(jnp.bfloat16), w2_ref[...],
                 preferred_element_type=jnp.float32) + b2_ref[...]
    h2 = jnp.maximum(h2, 0.0)

    h3 = jnp.dot(h2.astype(jnp.bfloat16), w3_ref[...],
                 preferred_element_type=jnp.float32) + b3_ref[...]

    # Store directly into the (tb, 5) output block (slice fused into kernel).
    o_ref[...] = jax.nn.sigmoid(h3)


def _auto_tile_cap():
    """Generation-aware batch-tile cap based on VMEM capacity."""
    try:
        info = pltpu.get_tpu_info()
        vmem = int(getattr(info, "vmem_capacity_bytes", 64 << 20))
    except Exception:
        vmem = 64 << 20
    # v5e/v6e (128 MiB VMEM): bigger tiles; v7x (64 MiB / TC): stay at 8192.
    return 16384 if vmem >= (100 << 20) else 8192


def linear_relu_forward(x, params, *, tile_b=None):
    """x: [B, 6] f32 -> [B, 5] f32. Weights stored as [in, out] (x @ W + b)."""
    w1, b1, w2, b2, w3, b3 = params
    B, in_dim = x.shape
    hidden = w1.shape[1]
    out_dim = w3.shape[1]

    # --- batch tiling -------------------------------------------------------
    cap = _auto_tile_cap()
    b8 = _round_up(max(B, 1), 8)
    tb = cap if tile_b is None else max(8, int(tile_b))
    tb = min(_round_up(tb, 8), b8)           # sublane-aligned, never > batch
    # Guarantee >= 2 grid steps when the batch allows it (v7x megacore).
    if b8 >= 16 and pl.cdiv(b8, tb) < 2:
        tb = _round_up(pl.cdiv(b8, 2), 8)
    grid = (pl.cdiv(B, tb),)                 # Pallas clamps boundary blocks

    # --- VMEM budget: double-buffered x + out blocks (lane-padded to 128) ---
    lane_bytes = 128 * 4
    stream_bytes = 4 * tb * lane_bytes       # 2 bufs * (x block + out block)
    vmem_limit = int(min(stream_bytes + (8 << 20), 96 << 20))
    vmem_limit = max(vmem_limit, 16 << 20)

    # --- advisory cost estimate --------------------------------------------
    flops = 2 * B * (in_dim * hidden + hidden * hidden + hidden * out_dim)
    param_bytes = sum(int(a.size) * a.dtype.itemsize for a in params)
    cost = pl.CostEstimate(
        flops=int(flops),
        transcendentals=int(B * out_dim),
        bytes_accessed=int(B * (in_dim + out_dim) * 4 + param_bytes),
    )

    out = pl.pallas_call(
        mlp_kernel,
        out_shape=jax.ShapeDtypeStruct((B, out_dim), jnp.float32),
        grid_spec=pltpu.PrefetchScalarGridSpec(
            num_scalar_prefetch=0,
            grid=grid,
            in_specs=[
                pl.BlockSpec((tb, in_dim), lambda i: (i, 0)),  # x: streamed
                pl.BlockSpec(w1.shape, lambda i: (0, 0)),      # weights/biases:
                pl.BlockSpec(b1.shape, lambda i: (0, 0)),      # VMEM-resident
                pl.BlockSpec(w2.shape, lambda i: (0, 0)),
                pl.BlockSpec(b2.shape, lambda i: (0, 0)),
                pl.BlockSpec(w3.shape, lambda i: (0, 0)),
                pl.BlockSpec(b3.shape, lambda i: (0, 0)),
            ],
            out_specs=pl.BlockSpec((tb, out_dim), lambda i: (i, 0)),
        ),
        compiler_params=pltpu.CompilerParams(
            dimension_semantics=("parallel",),   # megacore sharding on v7x
            vmem_limit_bytes=vmem_limit,
        ),
        cost_estimate=cost,
    )(x, w1, b1, w2, b2, w3, b3)

    return out


def init_params(key, l=32):
    """Deterministic init. Weights [in, out] in bf16 (MXU input), biases f32."""
    ks = jax.random.split(key, 6)

    def uinit(k, shape, fan_in, dtype):
        bound = 1.0 / jnp.sqrt(fan_in)
        return jax.random.uniform(k, shape, jnp.float32, -bound, bound).astype(dtype)

    w1 = uinit(ks[0], (6, l), 6, jnp.bfloat16)
    b1 = uinit(ks[1], (1, l), 6, jnp.float32)
    w2 = uinit(ks[2], (l, l), l, jnp.bfloat16)
    b2 = uinit(ks[3], (1, l), l, jnp.float32)
    w3 = uinit(ks[4], (l, 5), l, jnp.bfloat16)
    b3 = uinit(ks[5], (1, 5), l, jnp.float32)
    return (w1, b1, w2, b2, w3, b3)


def _reference(x, params):
    """Pure-JAX reference mirroring the kernel precision (bf16 in, f32 acc)."""
    w1, b1, w2, b2, w3, b3 = params
    h = jnp.dot(x.astype(jnp.bfloat16), w1, preferred_element_type=jnp.float32) + b1
    h = jnp.maximum(h, 0.0)
    h = jnp.dot(h.astype(jnp.bfloat16), w2, preferred_element_type=jnp.float32) + b2
    h = jnp.maximum(h, 0.0)
    h = jnp.dot(h.astype(jnp.bfloat16), w3, preferred_element_type=jnp.float32) + b3
    return jax.nn.sigmoid(h)


if __name__ == "__main__":
    key = jax.random.PRNGKey(0)
    k_x, k_x2, k_p = jax.random.split(key, 3)

    B, L = 8, 32
    params = init_params(k_p, l=L)

    # Small case (single tile).
    x = jax.random.normal(k_x, (B, 6), dtype=jnp.float32)
    out = jax.block_until_ready(linear_relu_forward(x, params))
    ref = _reference(x, params)
    assert out.shape == (B, 5)
    assert jnp.allclose(out, ref, atol=2e-3, rtol=2e-3)

    # Ragged batch, auto tile: split into >=2 grid steps with a clamped tail.
    B2 = 300
    x2 = jax.random.normal(k_x2, (B2, 6), dtype=jnp.float32)
    out2 = jax.block_until_ready(linear_relu_forward(x2, params))
    ref2 = _reference(x2, params)
    assert out2.shape == (B2, 5)
    assert jnp.allclose(out2, ref2, atol=2e-3, rtol=2e-3)

    # Ragged batch, small explicit tile: exercises multi-step grid with a
    # non-dividing boundary block (no wrapper pad/slice passes anywhere).
    out3 = jax.block_until_ready(linear_relu_forward(x2, params, tile_b=64))
    assert out3.shape == (B2, 5)
    assert jnp.allclose(out3, ref2, atol=2e-3, rtol=2e-3)

    print("KERNEL_OK")
</pallas_src>

<mosaic_0001>
module attributes {stable_mosaic.version = 11 : i64} {
  func.func @mlp_kernel(%arg0: i32, %arg1: memref<8x6xf32, #tpu.memory_space<vmem>>, %arg2: memref<6x32xbf16, #tpu.memory_space<vmem>>, %arg3: memref<1x32xf32, #tpu.memory_space<vmem>>, %arg4: memref<32x32xbf16, #tpu.memory_space<vmem>>, %arg5: memref<1x32xf32, #tpu.memory_space<vmem>>, %arg6: memref<32x5xbf16, #tpu.memory_space<vmem>>, %arg7: memref<1x5xf32, #tpu.memory_space<vmem>>, %arg8: memref<8x5xf32, #tpu.memory_space<vmem>>) attributes {dimension_semantics = [#tpu.dimension_semantics<parallel>], iteration_bounds = array<i64: 1>, scalar_prefetch = 0 : i64, scratch_operands = 0 : i64, tpu.core_type = #tpu.core_type<tc>, window_params = [{transform_indices = @transform_0, window_bounds = array<i64: 8, 6>}, {pipeline_mode = #tpu.pipeline_mode<synchronous>, transform_indices = @transform_1, window_bounds = array<i64: 6, 32>}, {pipeline_mode = #tpu.pipeline_mode<synchronous>, transform_indices = @transform_2, window_bounds = array<i64: 1, 32>}, {pipeline_mode = #tpu.pipeline_mode<synchronous>, transform_indices = @transform_3, window_bounds = array<i64: 32, 32>}, {pipeline_mode = #tpu.pipeline_mode<synchronous>, transform_indices = @transform_4, window_bounds = array<i64: 1, 32>}, {pipeline_mode = #tpu.pipeline_mode<synchronous>, transform_indices = @transform_5, window_bounds = array<i64: 32, 5>}, {pipeline_mode = #tpu.pipeline_mode<synchronous>, transform_indices = @transform_6, window_bounds = array<i64: 1, 5>}, {transform_indices = @transform_7, window_bounds = array<i64: 8, 5>}]} {
    %c0 = arith.constant 0 : index
    %c0_0 = arith.constant 0 : index
    %0 = vector.load %arg1[%c0, %c0_0] : memref<8x6xf32, #tpu.memory_space<vmem>>, vector<8x6xf32>
    %1 = arith.truncf %0 : vector<8x6xf32> to vector<8x6xbf16>
    %c0_1 = arith.constant 0 : index
    %c0_2 = arith.constant 0 : index
    %2 = vector.load %arg2[%c0_1, %c0_2] : memref<6x32xbf16, #tpu.memory_space<vmem>>, vector<6x32xbf16>
    %cst = arith.constant dense<0.000000e+00> : vector<8x32xf32>
    %3 = tpu.matmul %1, %2, %cst {dimension_numbers = #tpu.dot_dimension_numbers<[1], [0], [0], [1], [0, 0, 1, 1], [], []>} : vector<8x6xbf16>, vector<6x32xbf16>, vector<8x32xf32> -> vector<8x32xf32>
    %c0_3 = arith.constant 0 : index
    %c0_4 = arith.constant 0 : index
    %4 = vector.load %arg3[%c0_3, %c0_4] : memref<1x32xf32, #tpu.memory_space<vmem>>, vector<1x32xf32>
    %5 = vector.broadcast %4 : vector<1x32xf32> to vector<8x32xf32>
    %6 = arith.addf %3, %5 : vector<8x32xf32>
    %cst_5 = arith.constant 0.000000e+00 : f32
    %7 = vector.broadcast %cst_5 : f32 to vector<8x32xf32>
    %8 = arith.maximumf %6, %7 : vector<8x32xf32>
    %9 = arith.truncf %8 : vector<8x32xf32> to vector<8x32xbf16>
    %c0_6 = arith.constant 0 : index
    %c0_7 = arith.constant 0 : index
    %10 = vector.load %arg4[%c0_6, %c0_7] : memref<32x32xbf16, #tpu.memory_space<vmem>>, vector<32x32xbf16>
    %cst_8 = arith.constant dense<0.000000e+00> : vector<8x32xf32>
    %11 = tpu.matmul %9, %10, %cst_8 {dimension_numbers = #tpu.dot_dimension_numbers<[1], [0], [0], [1], [0, 0, 1, 1], [], []>} : vector<8x32xbf16>, vector<32x32xbf16>, vector<8x32xf32> -> vector<8x32xf32>
    %c0_9 = arith.constant 0 : index
    %c0_10 = arith.constant 0 : index
    %12 = vector.load %arg5[%c0_9, %c0_10] : memref<1x32xf32, #tpu.memory_space<vmem>>, vector<1x32xf32>
    %13 = vector.broadcast %12 : vector<1x32xf32> to vector<8x32xf32>
    %14 = arith.addf %11, %13 : vector<8x32xf32>
    %cst_11 = arith.constant 0.000000e+00 : f32
    %15 = vector.broadcast %cst_11 : f32 to vector<8x32xf32>
    %16 = arith.maximumf %14, %15 : vector<8x32xf32>
    %17 = arith.truncf %16 : vector<8x32xf32> to vector<8x32xbf16>
    %c0_12 = arith.constant 0 : index
    %c0_13 = arith.constant 0 : index
    %18 = vector.load %arg6[%c0_12, %c0_13] : memref<32x5xbf16, #tpu.memory_space<vmem>>, vector<32x5xbf16>
    %cst_14 = arith.constant dense<0.000000e+00> : vector<8x5xf32>
    %19 = tpu.matmul %17, %18, %cst_14 {dimension_numbers = #tpu.dot_dimension_numbers<[1], [0], [0], [1], [0, 0, 1, 1], [], []>} : vector<8x32xbf16>, vector<32x5xbf16>, vector<8x5xf32> -> vector<8x5xf32>
    %c0_15 = arith.constant 0 : index
    %c0_16 = arith.constant 0 : index
    %20 = vector.load %arg7[%c0_15, %c0_16] : memref<1x5xf32, #tpu.memory_space<vmem>>, vector<1x5xf32>
    %21 = vector.broadcast %20 : vector<1x5xf32> to vector<8x5xf32>
    %22 = arith.addf %19, %21 : vector<8x5xf32>
    %23 = arith.negf %22 : vector<8x5xf32>
    %24 = math.exp %23 : vector<8x5xf32>
    %cst_17 = arith.constant 1.000000e+00 : f32
    %25 = vector.broadcast %cst_17 : f32 to vector<8x5xf32>
    %26 = arith.addf %25, %24 : vector<8x5xf32>
    %27 = arith.divf %25, %26 : vector<8x5xf32>
    %c0_18 = arith.constant 0 : index
    %c0_19 = arith.constant 0 : index
    %28 = vector.load %arg8[%c0_18, %c0_19] : memref<8x5xf32, #tpu.memory_space<vmem>>, vector<8x5xf32>
    tpu.vector_store %arg8[%c0_18, %c0_19], %27 {strides = array<i32>} : memref<8x5xf32, #tpu.memory_space<vmem>>, vector<8x5xf32>,
    return
  }
  func.func @transform_0(%arg0: i32) -> (i32, i32) {
    %c0_i32 = arith.constant 0 : i32
    %c0_i32_0 = arith.constant 0 : i32
    return %arg0, %c0_i32 : i32, i32
  }
  func.func @transform_1(%arg0: i32) -> (i32, i32) {
    %c0_i32 = arith.constant 0 : i32
    %c0_i32_0 = arith.constant 0 : i32
    %c0_i32_1 = arith.constant 0 : i32
    return %c0_i32, %c0_i32_0 : i32, i32
  }
  func.func @transform_2(%arg0: i32) -> (i32, i32) {
    %c0_i32 = arith.constant 0 : i32
    %c0_i32_0 = arith.constant 0 : i32
    %c0_i32_1 = arith.constant 0 : i32
    return %c0_i32, %c0_i32_0 : i32, i32
  }
  func.func @transform_3(%arg0: i32) -> (i32, i32) {
    %c0_i32 = arith.constant 0 : i32
    %c0_i32_0 = arith.constant 0 : i32
    %c0_i32_1 = arith.constant 0 : i32
    return %c0_i32, %c0_i32_0 : i32, i32
  }
  func.func @transform_4(%arg0: i32) -> (i32, i32) {
    %c0_i32 = arith.constant 0 : i32
    %c0_i32_0 = arith.constant 0 : i32
    %c0_i32_1 = arith.constant 0 : i32
    return %c0_i32, %c0_i32_0 : i32, i32
  }
  func.func @transform_5(%arg0: i32) -> (i32, i32) {
    %c0_i32 = arith.constant 0 : i32
    %c0_i32_0 = arith.constant 0 : i32
    %c0_i32_1 = arith.constant 0 : i32
    return %c0_i32, %c0_i32_0 : i32, i32
  }
  func.func @transform_6(%arg0: i32) -> (i32, i32) {
    %c0_i32 = arith.constant 0 : i32
    %c0_i32_0 = arith.constant 0 : i32
    %c0_i32_1 = arith.constant 0 : i32
    return %c0_i32, %c0_i32_0 : i32, i32
  }
  func.func @transform_7(%arg0: i32) -> (i32, i32) {
    %c0_i32 = arith.constant 0 : i32
    %c0_i32_0 = arith.constant 0 : i32
    return %arg0, %c0_i32 : i32, i32
  }
}

</mosaic_0001>

<llo_original>
// kernel: tpu_custom_call.1
$region0: #{tpu_custom_call.1}
  #allocation0 [shape = 'u32[]', space=smem, size = 0x4, offset = 0x4, fixed_abs, tag = 'smem constant byte address 0x4 - core index']
  #allocation1 [shape = 'u32[144,128]{1,0:T(1,128)}', space=vmem, size = 0x12000, scoped, tag = 'internal scratch']
  %s0 = inlined_call_operand.vmem [shape: f32[8,6], index: 0, kind: input, shape index: {}]
  %s1 = inlined_call_operand.vmem [shape: bf16[6,32], index: 1, kind: input, shape index: {}]
  %s2 = inlined_call_operand.vmem [shape: f32[1,32], index: 2, kind: input, shape index: {}]
  %s3 = inlined_call_operand.vmem [shape: bf16[32,32], index: 3, kind: input, shape index: {}]
  %s4 = inlined_call_operand.vmem [shape: f32[1,32], index: 4, kind: input, shape index: {}]
  %s5 = inlined_call_operand.vmem [shape: bf16[32,5], index: 5, kind: input, shape index: {}]
  %s6 = inlined_call_operand.vmem [shape: f32[1,5], index: 6, kind: input, shape index: {}]
  %s7 = inlined_call_operand.hbm [shape: f32[8,5], index: 7, kind: output, shape index: {}]
  %s8 = sld [smem:[#allocation0]]
  $region38: #{tpu_custom_call.1} parent=0
    _
  %s10 = ssub.s32 1, %s8
  %s11 = scalar_select 0, %s10, %s8
  $region1: #{tpu_custom_call.1} parent=0
    #allocation2 [shape = 'u8[4096]{0}', space=vmem, size = 0x1000, scoped, tag = 'output window, operand 0, single buffered']
    #allocation3 [shape = 's32[1]{0}', space=sflag, size = 0x4, scoped, tag = 'scoped memory for tpu_custom_call.1']
    %12 = vsyncpa [#allocation3], 0
    // Predicated region
    $region2: #{tpu_custom_call.1} parent=1 // pred_check
      _
    $region3: #{tpu_custom_call.1} parent=1 // pred_check_branch
      %14 = sbr.rel (0) target = $region5
    $region4: #{tpu_custom_call.1} parent=1 // pred_region
      _
    $region5: #{tpu_custom_call.1} parent=1 // pred_fallthru
      _
    // Predicated region
    $region6: #{tpu_custom_call.1} parent=1 // pred_check
      _
    $region7: #{tpu_custom_call.1} parent=1 // pred_check_branch
      %16 = sbr.rel (0) target = $region9
    $region8: #{tpu_custom_call.1} parent=1 // pred_region
      _
    $region9: #{tpu_custom_call.1} parent=1 // pred_fallthru
      _
    // Predicated region
    $region10: #{tpu_custom_call.1} parent=1 // pred_check
      _
    $region11: #{tpu_custom_call.1} parent=1 // pred_check_branch
      %18 = sbr.rel (0) target = $region13
    $region12: #{tpu_custom_call.1} parent=1 // pred_region
      _
    $region13: #{tpu_custom_call.1} parent=1 // pred_fallthru
      _
    // Predicated region
    $region14: #{tpu_custom_call.1} parent=1 // pred_check
      _
    $region15: #{tpu_custom_call.1} parent=1 // pred_check_branch
      %20 = sbr.rel (0) target = $region17
    $region16: #{tpu_custom_call.1} parent=1 // pred_region
      _
    $region17: #{tpu_custom_call.1} parent=1 // pred_fallthru
      _
    // Predicated region
    $region18: #{tpu_custom_call.1} parent=1 // pred_check
      _
    $region19: #{tpu_custom_call.1} parent=1 // pred_check_branch
      %22 = sbr.rel (0) target = $region21
    $region20: #{tpu_custom_call.1} parent=1 // pred_region
      _
    $region21: #{tpu_custom_call.1} parent=1 // pred_fallthru
      _
    // Predicated region
    $region22: #{tpu_custom_call.1} parent=1 // pred_check
      _
    $region23: #{tpu_custom_call.1} parent=1 // pred_check_branch
      %24 = sbr.rel (0) target = $region25
    $region24: #{tpu_custom_call.1} parent=1 // pred_region
      _
    $region25: #{tpu_custom_call.1} parent=1 // pred_fallthru
      _
    // Predicated region
    $region26: #{tpu_custom_call.1} parent=1 // pred_check
      _
    $region27: #{tpu_custom_call.1} parent=1 // pred_check_branch
      %26 = sbr.rel (0) target = $region29
    $region28: #{tpu_custom_call.1} parent=1 // pred_region
      _
    $region29: #{tpu_custom_call.1} parent=1 // pred_fallthru
      _
    %v28 = vld [vmem:[%s0] sm:$0xff]
    %v29 = vpack.c.bf16 %v28, %v28
    %v30 = vld [vmem:[%s1] sm:$0x7]
    %v31 = vld [vmem:[%s2] sm:$0x1]
    %v33 = vlaneseq
    %v34 = vshrl.u32 %v33, 7
    %v35 = vsub.s32 0, %v34
    %v36 = vrot.slane %v31, %v35
    %vm38 = vcmask 48128
    %v40 = vsel %vm38, %v29, 0
    %vm42 = vcmask 1042432
    %v44 = vsel %vm42, %v30, 0
    %46 = vmatprep.subr.bf16.mxu0 0
    %47 = vmatpush1.bf16.msra.mxu0 %v44
    %48 = vmatprep.subr.bf16.mxu0 0
    %49 = vmatpush1.bf16.msra.mxu0 0
    %50 = vmatprep.subr.bf16.mxu0 0
    %51 = vmatpush1.bf16.msra.mxu0 0
    %52 = vmatprep.subr.bf16.mxu0 0
    %53 = vmatpush1.bf16.msra.mxu0 0
    %54 = vmatprep.subr.bf16.mxu0 0
    %55 = vmatpush1.bf16.msra.mxu0 0
    %56 = vmatprep.subr.bf16.mxu0 0
    %57 = vmatpush1.bf16.msra.mxu0 0
    %58 = vmatprep.subr.bf16.mxu0 0
    %59 = vmatpush1.bf16.msra.mxu0 0
    %60 = vmatprep.subr.bf16.mxu0 0
    %61 = vmatpush1.bf16.msra.mxu0 0
    %62 = vmatprep.subr.bf16.mxu0 0
    %63 = vmatpush1.bf16.msra.mxu0 0
    %64 = vmatprep.subr.bf16.mxu0 0
    %65 = vmatpush1.bf16.msra.mxu0 0
    %66 = vmatprep.subr.bf16.mxu0 0
    %67 = vmatpush1.bf16.msra.mxu0 0
    %68 = vmatprep.subr.bf16.mxu0 0
    %69 = vmatpush1.bf16.msra.mxu0 0
    %70 = vmatprep.subr.bf16.mxu0 0
    %71 = vmatpush1.bf16.msra.mxu0 0
    %72 = vmatprep.subr.bf16.mxu0 0
    %73 = vmatpush1.bf16.msra.mxu0 0
    %74 = vmatprep.subr.bf16.mxu0 0
    %75 = vmatpush1.bf16.msra.mxu0 0
    %76 = vmatprep.subr.bf16.mxu0 0
    %77 = vmatpush1.bf16.msra.mxu0 0
    %78 = vmatprep.mubr.bf16.mxu0 0
    %79 = vmatmul.mubr.bf16.gmra.mrb[0].mxu0 %v40
    %v80 = vpop.f32.mrb[0].mxu0
    %v81 = vadd.f32 %v36, %v80
    %v82 = vpop.f32.mrb[0].mxu0
    %v83 = vpop.f32.mrb[0].mxu0
    %v84 = vpop.f32.mrb[0].mxu0
    %85 = vdwg.mxu0
    %v86 = vmax.f32 %v81, 0.0
    %v87 = vpack.c.bf16 %v86, %v86
    %v88 = vld [vmem:[%s3] sm:$0xf]
    %v89 = vld [vmem:[%s3 + $0x4] sm:$0xf]
    %v90 = vld [vmem:[%s3 + $0x8] sm:$0xf]
    %v91 = vld [vmem:[%s3 + $0xc] sm:$0xf]
    %v92 = vld [vmem:[%s4] sm:$0x1]
    %v94 = vlaneseq
    %v95 = vshrl.u32 %v94, 7
    %v96 = vsub.s32 0, %v95
    %v97 = vrot.slane %v92, %v96
    %v103 = vunpack.c.l.b16 %v88
    %v104 = vunpack.c.l.b16 %v89
    %v105 = vunpack.c.l.b16 %v90
    %v106 = vunpack.c.l.b16 %v91
    %v107 = vpack.c.b16 %v104, %v103
    %v108 = vpack.c.b16 %v106, %v105
    %vm111 = vcmask 261120
    %v113 = vsel %vm111, %v87, 0
    %115 = vmatprep.subr.bf16.mxu0 0
    %116 = vmatpush1.bf16.msra.mxu0 %v107
    %117 = vmatprep.subr.bf16.mxu0 0
    %118 = vmatpush1.bf16.msra.mxu0 %v108
    %119 = vmatprep.subr.bf16.mxu0 0
    %120 = vmatpush1.bf16.msra.mxu0 0
    %121 = vmatprep.subr.bf16.mxu0 0
    %122 = vmatpush1.bf16.msra.mxu0 0
    %123 = vmatprep.subr.bf16.mxu0 0
    %124 = vmatpush1.bf16.msra.mxu0 0
    %125 = vmatprep.subr.bf16.mxu0 0
    %126 = vmatpush1.bf16.msra.mxu0 0
    %127 = vmatprep.subr.bf16.mxu0 0
    %128 = vmatpush1.bf16.msra.mxu0 0
    %129 = vmatprep.subr.bf16.mxu0 0
    %130 = vmatpush1.bf16.msra.mxu0 0
    %131 = vmatprep.subr.bf16.mxu0 0
    %132 = vmatpush1.bf16.msra.mxu0 0
    %133 = vmatprep.subr.bf16.mxu0 0
    %134 = vmatpush1.bf16.msra.mxu0 0
    %135 = vmatprep.subr.bf16.mxu0 0
    %136 = vmatpush1.bf16.msra.mxu0 0
    %137 = vmatprep.subr.bf16.mxu0 0
    %138 = vmatpush1.bf16.msra.mxu0 0
    %139 = vmatprep.subr.bf16.mxu0 0
    %140 = vmatpush1.bf16.msra.mxu0 0
    %141 = vmatprep.subr.bf16.mxu0 0
    %142 = vmatpush1.bf16.msra.mxu0 0
    %143 = vmatprep.subr.bf16.mxu0 0
    %144 = vmatpush1.bf16.msra.mxu0 0
    %145 = vmatprep.subr.bf16.mxu0 0
    %146 = vmatpush1.bf16.msra.mxu0 0
    %147 = vmatprep.mubr.bf16.mxu0 0
    %148 = vmatmul.mubr.bf16.gmra.mrb[0].mxu0 %v113
    %v149 = vpop.f32.mrb[0].mxu0
    %v150 = vadd.f32 %v97, %v149
    %v151 = vpop.f32.mrb[0].mxu0
    %v152 = vpop.f32.mrb[0].mxu0
    %v153 = vpop.f32.mrb[0].mxu0
    %154 = vdwg.mxu0
    %v155 = vmax.f32 %v150, 0.0
    %v156 = vpack.c.bf16 %v155, %v155
    %v157 = vld [vmem:[%s5] sm:$0xf]
    %v158 = vld [vmem:[%s5 + $0x4] sm:$0xf]
    %v159 = vld [vmem:[%s5 + $0x8] sm:$0xf]
    %v160 = vld [vmem:[%s5 + $0xc] sm:$0xf]
    %v161 = vld [vmem:[%s6] sm:$0x1]
    %v163 = vlaneseq
    %v164 = vshrl.u32 %v163, 7
    %v165 = vsub.s32 0, %v164
    %v166 = vrot.slane %v161, %v165
    %v172 = vunpack.c.l.b16 %v157
    %v173 = vunpack.c.l.b16 %v158
    %v174 = vunpack.c.l.b16 %v159
    %v175 = vunpack.c.l.b16 %v160
    %v176 = vpack.c.b16 %v173, %v172
    %v177 = vpack.c.b16 %v175, %v174
    %v181 = vsel %vm111, %v156, 0
    %183 = vmatprep.subr.bf16.mxu0 0
    %184 = vmatpush1.bf16.msra.mxu0 %v176
    %185 = vmatprep.subr.bf16.mxu0 0
    %186 = vmatpush1.bf16.msra.mxu0 %v177
    %187 = vmatprep.subr.bf16.mxu0 0
    %188 = vmatpush1.bf16.msra.mxu0 0
    %189 = vmatprep.subr.bf16.mxu0 0
    %190 = vmatpush1.bf16.msra.mxu0 0
    %191 = vmatprep.subr.bf16.mxu0 0
    %192 = vmatpush1.bf16.msra.mxu0 0
    %193 = vmatprep.subr.bf16.mxu0 0
    %194 = vmatpush1.bf16.msra.mxu0 0
    %195 = vmatprep.subr.bf16.mxu0 0
    %196 = vmatpush1.bf16.msra.mxu0 0
    %197 = vmatprep.subr.bf16.mxu0 0
    %198 = vmatpush1.bf16.msra.mxu0 0
    %199 = vmatprep.subr.bf16.mxu0 0
    %200 = vmatpush1.bf16.msra.mxu0 0
    %201 = vmatprep.subr.bf16.mxu0 0
    %202 = vmatpush1.bf16.msra.mxu0 0
    %203 = vmatprep.subr.bf16.mxu0 0
    %204 = vmatpush1.bf16.msra.mxu0 0
    %205 = vmatprep.subr.bf16.mxu0 0
    %206 = vmatpush1.bf16.msra.mxu0 0
    %207 = vmatprep.subr.bf16.mxu0 0
    %208 = vmatpush1.bf16.msra.mxu0 0
    %209 = vmatprep.subr.bf16.mxu0 0
    %210 = vmatpush1.bf16.msra.mxu0 0
    %211 = vmatprep.subr.bf16.mxu0 0
    %212 = vmatpush1.bf16.msra.mxu0 0
    %213 = vmatprep.subr.bf16.mxu0 0
    %214 = vmatpush1.bf16.msra.mxu0 0
    %215 = vmatprep.mubr.bf16.mxu0 0
    %216 = vmatmul.mubr.bf16.gmra.mrb[0].mxu0 %v181
    %v217 = vpop.f32.mrb[0].mxu0
    %v218 = vadd.f32 %v166, %v217
    %v219 = vpop.f32.mrb[0].mxu0
    %v220 = vpop.f32.mrb[0].mxu0
    %v221 = vpop.f32.mrb[0].mxu0
    %222 = vdwg.mxu0
    %v223 = vxor.u32 %v218, 2147483648
    %v224 = vmul.f32 %v223, 1.442695
    %v225 = vpow.pop %v224
    %v226 = vadd.f32 %v225, 1.0
    %v227 = vrcp.pop %v226
    %v228 = vmul.f32 1.0, %v227
    %vm229 = vcmask 39936
    %230 = vst.msk [vmem:[#allocation2] sm:$0xff] %vm229, %v228
    // Predicated region
    $region30: #{tpu_custom_call.1} parent=1 // pred_check
      _
    $region31: #{tpu_custom_call.1} parent=1 // pred_check_branch
      %232 = sbr.rel (0) target = $region33
    $region32: #{tpu_custom_call.1} parent=1 // pred_region
      %s234 = ssub.s32 128, 128
      %235 = vsyncadd [#allocation3], %s234
      %s237 = sshll.u32 [#allocation2], 4
      %s238 = int_to_ptr.vmem [resolvable:$true] %s237
      %240 = dma.vmem_to_hbm [thread:$0]  %s238, 128, %s7, [#allocation3]
    $region33: #{tpu_custom_call.1} parent=1 // pred_fallthru
      _
    // Predicated region
    $region34: #{tpu_custom_call.1} parent=1 // pred_check
      _
    $region35: #{tpu_custom_call.1} parent=1 // pred_check_branch
      %242 = sbr.rel (0) target = $region37
    $region36: #{tpu_custom_call.1} parent=1 // pred_region
      %243 = dma.done [#allocation3], 128
    $region37: #{tpu_custom_call.1} parent=1 // pred_fallthru
      _
    %244 = vsyncpa [#allocation3], 1

</llo_original>
